<compile_context>
chip_gen: v6e
topology: v6e:2x2x1
jax: 0.10.0
libtpu: 0.0.40
codegen_flags: <defaults>
</compile_context>

<pallas_src>
import jax
import jax.numpy as jnp
from jax.experimental import pallas as pl
from jax.experimental.pallas import tpu as pltpu


def _fc_kernel(x_ref, w_ref, b_ref, o_ref):
    # x_ref: (Ci, TL)   w_ref: (Co, Ci)   b_ref: (Co, 1)   o_ref: (Co, TL)
    acc = jnp.dot(w_ref[...], x_ref[...], preferred_element_type=jnp.float32)
    acc = acc + b_ref[...].astype(jnp.float32)          # broadcast over lanes
    o_ref[...] = acc.astype(o_ref.dtype)                 # single full-width store


def _vmem_budget_bytes():
    """Generation-aware (budget_for_buffers, scoped_vmem_limit)."""
    try:
        cap = int(pltpu.get_tpu_info().vmem_capacity_bytes)
    except Exception:
        cap = 64 << 20          # conservative: fits v7x too
    budget = min(cap * 3 // 8, 64 << 20)          # v7x ~24 MiB, v5e/v6e ~48 MiB
    limit = min(cap - (8 << 20), budget + (8 << 20))
    return budget, int(limit)


def fc_block(x, weight, bias, groups, *, max_tl=8192, compute_dtype=None,
             use_group_grid=None):
    """Grouped pointwise Conv1d, PyTorch semantics.

    x:      (N, C_in, L)            (NCL layout, kept end-to-end)
    weight: (C_out, C_in//g, 1)
    bias:   (C_out,)
    Returns (N, C_out, L), matching nn.Conv1d(kernel_size=1, groups=groups).
    """
    N, C_in, L = x.shape
    C_out = weight.shape[0]
    assert C_in % groups == 0 and C_out % groups == 0
    cig, cog = C_in // groups, C_out // groups
    out_dtype = x.dtype

    if compute_dtype is not None:
        # bf16 path: halves streamed x bytes on this HBM-bound kernel; the dot
        # still accumulates in f32 (preferred_element_type) and the output is
        # cast back to the caller's dtype.
        x = x.astype(compute_dtype)
        weight = weight.astype(compute_dtype)
    itemsize = jnp.dtype(x.dtype).itemsize

    budget, vmem_limit = _vmem_budget_bytes()

    # ---- path selection -----------------------------------------------------
    aligned = (cig % 8 == 0) and (cog % 8 == 0)
    if use_group_grid is None:
        grouped = groups > 1 and C_in > 256 and aligned
    else:
        grouped = bool(use_group_grid) and groups > 1 and aligned

    if grouped:
        # Compact per-group weight on a (N, groups, L_tiles) grid.
        w_k = weight[..., 0].reshape(groups, cog, cig)
        b_k = bias.reshape(groups, cog, 1)
        ci_b, co_b = cig, cog
    else:
        # Block-diagonal weight -> one MXU matmul per tile (zeros are free for
        # small C_in thanks to MXU K padding).
        wg = weight[..., 0].reshape(groups, cog, cig)
        eye = jnp.eye(groups, dtype=wg.dtype)
        w_k = jnp.einsum("goc,gh->gohc", wg, eye).reshape(C_out, C_in)
        b_k = bias.reshape(C_out, 1)
        ci_b, co_b = C_in, C_out

    # ---- tiny-L: fold batch into lanes so the slab is lane-dense -------------
    fold_batch = (not grouped) and (L < 128) and (N > 1)
    if fold_batch:
        x_in = jnp.transpose(x, (1, 0, 2)).reshape(1, C_in, N * L)
        N_eff, L_eff = 1, N * L
    else:
        x_in = x
        N_eff, L_eff = N, L

    # ---- lane tile TL from the real VMEM budget ------------------------------
    # double-buffered x + out columns, plus the f32 matmul intermediate ...
    per_col = 2 * (ci_b + co_b) * itemsize + 4 * co_b
    # ... plus the (double-buffered) resident weight and bias.
    fixed = 2 * co_b * ci_b * itemsize + 2 * co_b * itemsize
    avail = max(budget - fixed, 128 * per_col)
    TL = max(128, min(max_tl, (avail // per_col) // 128 * 128))

    # v7x: keep >=2 grid steps when batch/group axes alone would give only 1,
    # so both TensorCores get work.
    n_par = N_eff * (groups if grouped else 1)
    if n_par == 1 and L_eff >= 256:
        TL = min(TL, max(128, ((L_eff + 1) // 2) // 128 * 128))
    if L_eff <= TL:
        TL = L_eff              # full-extent lane block: always legal, no mask

    grid_l = pl.cdiv(L_eff, TL)

    # TODO(synk): could pin weight/bias specs to pipeline_mode=pl.Buffered(1)
    # to drop one redundant resident copy from VMEM; skipped to stay on the
    # well-trodden default pipelining path.
    if grouped:
        grid = (N_eff, groups, grid_l)
        in_specs = [
            pl.BlockSpec((None, cig, TL), lambda n, g, l: (n, g, l)),
            pl.BlockSpec((None, cog, cig), lambda n, g, l: (g, 0, 0)),
            pl.BlockSpec((None, cog, 1), lambda n, g, l: (g, 0, 0)),
        ]
        out_specs = pl.BlockSpec((None, cog, TL), lambda n, g, l: (n, g, l))
        dims = ("parallel", "parallel", "parallel")
    else:
        grid = (N_eff, grid_l)
        in_specs = [
            pl.BlockSpec((None, C_in, TL), lambda n, l: (n, 0, l)),
            pl.BlockSpec((C_out, C_in), lambda n, l: (0, 0)),   # resident weight
            pl.BlockSpec((C_out, 1), lambda n, l: (0, 0)),      # resident bias
        ]
        out_specs = pl.BlockSpec((None, C_out, TL), lambda n, l: (n, 0, l))
        dims = ("parallel", "parallel")

    out = pl.pallas_call(
        _fc_kernel,
        out_shape=jax.ShapeDtypeStruct((N_eff, C_out, L_eff), out_dtype),
        grid=grid,
        in_specs=in_specs,
        out_specs=out_specs,
        compiler_params=pltpu.CompilerParams(
            dimension_semantics=dims,
            vmem_limit_bytes=vmem_limit),
    )(x_in, w_k, b_k)

    if fold_batch:
        out = jnp.transpose(out[0].reshape(C_out, N, L), (1, 0, 2))
    return out


def _reference(x, weight, bias, groups):
    # Pure-JAX reference for the grouped 1x1 conv.
    N, C_in, L = x.shape
    C_out = weight.shape[0]
    cig = C_in // groups
    cog = C_out // groups
    w = weight[..., 0].reshape(groups, cog, cig)          # (g, cog, cig)
    xg = x.reshape(N, groups, cig, L)                     # (N, g, cig, L)
    y = jnp.einsum("ngil,goi->ngol", xg, w)               # (N, g, cog, L)
    y = y.reshape(N, C_out, L) + bias[None, :, None]
    return y


def _make_inputs(key, N, C_in, C_out, groups, L):
    kx, kw, kb = jax.random.split(key, 3)
    x = jax.random.normal(kx, (N, C_in, L), dtype=jnp.float32)
    fan_in = (C_in // groups) * 1
    bound = 1.0 / jnp.sqrt(jnp.float32(fan_in))
    weight = jax.random.uniform(kw, (C_out, C_in // groups, 1),
                                dtype=jnp.float32, minval=-bound, maxval=bound)
    bias = jax.random.uniform(kb, (C_out,), dtype=jnp.float32,
                              minval=-bound, maxval=bound)
    return x, weight, bias


def _check(out, x, weight, bias, groups):
    ref = _reference(x, weight, bias, groups)
    assert out.shape == ref.shape, (out.shape, ref.shape)
    assert jnp.allclose(out, ref, atol=1e-5, rtol=1e-5), (
        float(jnp.max(jnp.abs(out - ref))))


if __name__ == "__main__":
    key = jax.random.PRNGKey(0)
    k1, k2, k3 = jax.random.split(key, 3)

    # 1) Module-consistent tiny shapes: batch=2, in=8, out=16, groups=2, L=16.
    #    Exercises the fold-batch (lane-dense, single grid step) path.
    x, w, b = _make_inputs(k1, 2, 8, 16, 2, 16)
    out = jax.block_until_ready(fc_block(x, w, b, 2))
    _check(out, x, w, b, 2)

    # 2) Ragged-L path (no pad / no slice): L=200 with a 128-lane tile gives a
    #    masked final block.
    x, w, b = _make_inputs(k2, 2, 8, 16, 2, 200)
    out = jax.block_until_ready(fc_block(x, w, b, 2, max_tl=128))
    _check(out, x, w, b, 2)

    # 3) Grouped-grid path (compact per-group weight on a (N, g, L) grid),
    #    forced on small aligned shapes: in=32, out=32, groups=4, L=256.
    x, w, b = _make_inputs(k3, 2, 32, 32, 4, 256)
    out = jax.block_until_ready(fc_block(x, w, b, 4, use_group_grid=True))
    _check(out, x, w, b, 4)

    print("KERNEL_OK")
</pallas_src>

<mosaic_0001>
module attributes {stable_mosaic.version = 11 : i64} {
  func.func @_fc_kernel(%arg0: i32, %arg1: i32, %arg2: memref<1x8x32xf32, #tpu.memory_space<vmem>>, %arg3: memref<16x8xf32, #tpu.memory_space<vmem>>, %arg4: memref<16x1xf32, #tpu.memory_space<vmem>>, %arg5: memref<1x16x32xf32, #tpu.memory_space<vmem>>) attributes {dimension_semantics = [#tpu.dimension_semantics<parallel>, #tpu.dimension_semantics<parallel>], iteration_bounds = array<i64: 1, 1>, scalar_prefetch = 0 : i64, scratch_operands = 0 : i64, tpu.core_type = #tpu.core_type<tc>, window_params = [{transform_indices = @transform_0, window_bounds = array<i64: 1, 8, 32>}, {pipeline_mode = #tpu.pipeline_mode<synchronous>, transform_indices = @transform_1, window_bounds = array<i64: 16, 8>}, {pipeline_mode = #tpu.pipeline_mode<synchronous>, transform_indices = @transform_2, window_bounds = array<i64: 16, 1>}, {transform_indices = @transform_3, window_bounds = array<i64: 1, 16, 32>}]} {
    %c0 = arith.constant 0 : index
    %c0_0 = arith.constant 0 : index
    %0 = vector.load %arg3[%c0, %c0_0] : memref<16x8xf32, #tpu.memory_space<vmem>>, vector<16x8xf32>
    %c0_1 = arith.constant 0 : index
    %c0_2 = arith.constant 0 : index
    %c0_3 = arith.constant 0 : index
    %1 = vector.load %arg2[%c0_1, %c0_2, %c0_3] : memref<1x8x32xf32, #tpu.memory_space<vmem>>, vector<1x8x32xf32>
    %2 = vector.shape_cast %1 : vector<1x8x32xf32> to vector<8x32xf32>
    %cst = arith.constant dense<0.000000e+00> : vector<16x32xf32>
    %3 = tpu.matmul %0, %2, %cst {dimension_numbers = #tpu.dot_dimension_numbers<[1], [0], [0], [1], [0, 0, 1, 1], [], []>} : vector<16x8xf32>, vector<8x32xf32>, vector<16x32xf32> -> vector<16x32xf32>
    %c0_4 = arith.constant 0 : index
    %c0_5 = arith.constant 0 : index
    %4 = vector.load %arg4[%c0_4, %c0_5] : memref<16x1xf32, #tpu.memory_space<vmem>>, vector<16x1xf32>
    %5 = vector.broadcast %4 : vector<16x1xf32> to vector<16x32xf32>
    %6 = arith.addf %3, %5 : vector<16x32xf32>
    %c0_6 = arith.constant 0 : index
    %c0_7 = arith.constant 0 : index
    %c0_8 = arith.constant 0 : index
    %7 = vector.load %arg5[%c0_6, %c0_7, %c0_8] : memref<1x16x32xf32, #tpu.memory_space<vmem>>, vector<1x16x32xf32>
    %8 = vector.shape_cast %7 : vector<1x16x32xf32> to vector<16x32xf32>
    %9 = vector.shape_cast %6 : vector<16x32xf32> to vector<1x16x32xf32>
    tpu.vector_store %arg5[%c0_6, %c0_7, %c0_8], %9 {strides = array<i32>} : memref<1x16x32xf32, #tpu.memory_space<vmem>>, vector<1x16x32xf32>,
    return
  }
  func.func @transform_0(%arg0: i32, %arg1: i32) -> (i32, i32, i32) {
    %c0_i32 = arith.constant 0 : i32
    %c0_i32_0 = arith.constant 0 : i32
    return %arg0, %c0_i32, %arg1 : i32, i32, i32
  }
  func.func @transform_1(%arg0: i32, %arg1: i32) -> (i32, i32) {
    %c0_i32 = arith.constant 0 : i32
    %c0_i32_0 = arith.constant 0 : i32
    %c0_i32_1 = arith.constant 0 : i32
    return %c0_i32, %c0_i32_0 : i32, i32
  }
  func.func @transform_2(%arg0: i32, %arg1: i32) -> (i32, i32) {
    %c0_i32 = arith.constant 0 : i32
    %c0_i32_0 = arith.constant 0 : i32
    %c0_i32_1 = arith.constant 0 : i32
    return %c0_i32, %c0_i32_0 : i32, i32
  }
  func.func @transform_3(%arg0: i32, %arg1: i32) -> (i32, i32, i32) {
    %c0_i32 = arith.constant 0 : i32
    %c0_i32_0 = arith.constant 0 : i32
    return %arg0, %c0_i32, %arg1 : i32, i32, i32
  }
}

</mosaic_0001>

<llo_original>
// kernel: tpu_custom_call.1
$region0: #{tpu_custom_call.1}
  #allocation0 [shape = 'u32[]', space=smem, size = 0x4, offset = 0x4, fixed_abs, tag = 'smem constant byte address 0x4 - core index']
  #allocation1 [shape = 'u32[144,128]{1,0:T(1,128)}', space=vmem, size = 0x12000, scoped, tag = 'internal scratch']
  %s0 = inlined_call_operand.vmem [shape: f32[1,8,32], index: 0, kind: input, shape index: {}]
  %s1 = inlined_call_operand.vmem [shape: f32[16,8], index: 1, kind: input, shape index: {}]
  %s2 = inlined_call_operand.vmem [shape: f32[16,1], index: 2, kind: input, shape index: {}]
  %s3 = inlined_call_operand.hbm [shape: f32[1,16,32], index: 3, kind: output, shape index: {}]
  %s4 = sld [smem:[#allocation0]]
  $region22: #{tpu_custom_call.1} parent=0
    _
  %s6 = ssub.s32 1, %s4
  %s7 = scalar_select 0, %s6, %s4
  $region1: #{tpu_custom_call.1} parent=0
    #allocation2 [shape = 'u8[8192]{0}', space=vmem, size = 0x2000, scoped, tag = 'output window, operand 0, single buffered']
    #allocation3 [shape = 's32[1]{0}', space=sflag, size = 0x4, scoped, tag = 'scoped memory for tpu_custom_call.1']
    %8 = vsyncpa [#allocation3], 0
    // Predicated region
    $region2: #{tpu_custom_call.1} parent=1 // pred_check
      _
    $region3: #{tpu_custom_call.1} parent=1 // pred_check_branch
      %10 = sbr.rel (0) target = $region5
    $region4: #{tpu_custom_call.1} parent=1 // pred_region
      _
    $region5: #{tpu_custom_call.1} parent=1 // pred_fallthru
      _
    // Predicated region
    $region6: #{tpu_custom_call.1} parent=1 // pred_check
      _
    $region7: #{tpu_custom_call.1} parent=1 // pred_check_branch
      %12 = sbr.rel (0) target = $region9
    $region8: #{tpu_custom_call.1} parent=1 // pred_region
      _
    $region9: #{tpu_custom_call.1} parent=1 // pred_fallthru
      _
    // Predicated region
    $region10: #{tpu_custom_call.1} parent=1 // pred_check
      _
    $region11: #{tpu_custom_call.1} parent=1 // pred_check_branch
      %14 = sbr.rel (0) target = $region13
    $region12: #{tpu_custom_call.1} parent=1 // pred_region
      _
    $region13: #{tpu_custom_call.1} parent=1 // pred_fallthru
      _
    %v15 = vld [vmem:[%s1] sm:$0xff]
    %v16 = vld [vmem:[%s1 + $0x8] sm:$0xff]
    %v17 = vld [vmem:[%s0] sm:$0xff]
    %v18 = vld [vmem:[%s2] sm:$0xff]
    %v19 = vld [vmem:[%s2 + $0x8] sm:$0xff]
    %21 = vset.pattern.permute.xlu0 0
    %22 = vperm.xlu0 %21, %v18
    %v23 = vpop.permute.xlu0 %22
    %26 = vset.pattern.permute.xlu0 0
    %27 = vperm.xlu0 %26, %v19
    %v28 = vpop.permute.xlu0 %27
    %vm30 = vcmask 64512
    %v32 = vsel %vm30, %v15, 0
    %v35 = vsel %vm30, %v16, 0
    %37 = vmatprep.subr.mxu0 0.0
    %38 = vmatpush1.msra.mxu0 0.0
    %39 = vmatprep.subr.mxu0 0.0
    %40 = vmatpush1.msra.mxu0 0.0
    %41 = vmatprep.subr.mxu0 0.0
    %42 = vmatpush1.msra.mxu0 0.0
    %43 = vmatprep.subr.mxu0 0.0
    %44 = vmatpush1.msra.mxu0 0.0
    %45 = vmatprep.subr.mxu0 0.0
    %46 = vmatpush1.msra.mxu0 0.0
    %47 = vmatprep.subr.mxu0 0.0
    %48 = vmatpush1.msra.mxu0 0.0
    %49 = vmatprep.subr.mxu0 0.0
    %50 = vmatpush1.msra.mxu0 0.0
    %51 = vmatprep.subr.mxu0 0.0
    %52 = vmatpush1.msra.mxu0 0.0
    %53 = vmatprep.subr.mxu0 0.0
    %54 = vmatpush1.msra.mxu0 0.0
    %55 = vmatprep.subr.mxu0 0.0
    %56 = vmatpush1.msra.mxu0 0.0
    %57 = vmatprep.subr.mxu0 0.0
    %58 = vmatpush1.msra.mxu0 0.0
    %59 = vmatprep.subr.mxu0 0.0
    %60 = vmatpush1.msra.mxu0 0.0
    %61 = vmatprep.subr.mxu0 0.0
    %62 = vmatpush1.msra.mxu0 0.0
    %63 = vmatprep.subr.mxu0 0.0
    %64 = vmatpush1.msra.mxu0 0.0
    %65 = vmatprep.subr.mxu0 0.0
    %66 = vmatpush1.msra.mxu0 0.0
    %67 = vmatprep.subr.mxu0 0.0
    %68 = vmatpush1.msra.mxu0 %v17
    %69 = vmatprep.subr.mxu0 0.0
    %70 = vmatpush2.msra.mxu0 0.0
    %71 = vmatprep.subr.mxu0 0.0
    %72 = vmatpush2.msra.mxu0 0.0
    %73 = vmatprep.subr.mxu0 0.0
    %74 = vmatpush2.msra.mxu0 0.0
    %75 = vmatprep.subr.mxu0 0.0
    %76 = vmatpush2.msra.mxu0 0.0
    %77 = vmatprep.subr.mxu0 0.0
    %78 = vmatpush2.msra.mxu0 0.0
    %79 = vmatprep.subr.mxu0 0.0
    %80 = vmatpush2.msra.mxu0 0.0
    %81 = vmatprep.subr.mxu0 0.0
    %82 = vmatpush2.msra.mxu0 0.0
    %83 = vmatprep.subr.mxu0 0.0
    %84 = vmatpush2.msra.mxu0 0.0
    %85 = vmatprep.subr.mxu0 0.0
    %86 = vmatpush2.msra.mxu0 0.0
    %87 = vmatprep.subr.mxu0 0.0
    %88 = vmatpush2.msra.mxu0 0.0
    %89 = vmatprep.subr.mxu0 0.0
    %90 = vmatpush2.msra.mxu0 0.0
    %91 = vmatprep.subr.mxu0 0.0
    %92 = vmatpush2.msra.mxu0 0.0
    %93 = vmatprep.subr.mxu0 0.0
    %94 = vmatpush2.msra.mxu0 0.0
    %95 = vmatprep.subr.mxu0 0.0
    %96 = vmatpush2.msra.mxu0 0.0
    %97 = vmatprep.subr.mxu0 0.0
    %98 = vmatpush2.msra.mxu0 0.0
    %99 = vmatprep.subr.mxu0 0.0
    %100 = vmatpush2.msra.mxu0 0.0
    %101 = vmatprep.mubr.f32.mxu0 0.0
    %102 = vmatmul.mubr.f32.gmra.mxu0 %v32
    %v103 = vpop.f32.mrf.mxu0
    %v104 = vadd.f32 %v23, %v103
    %v105 = vpop.f32.mrf.mxu0
    %106 = vmatprep.mubr.f32.mxu0 0.0
    %107 = vmatmul.mubr.f32.gmra.mxu0 %v35
    %v108 = vpop.f32.mrf.mxu0
    %v109 = vadd.f32 %v28, %v108
    %v110 = vpop.f32.mrf.mxu0
    %111 = vdwg.mxu0
    %vm112 = vcmask 261120
    %113 = vst.msk [vmem:[#allocation2] sm:$0xff] %vm112, %v104
    %114 = vst.msk [vmem:[#allocation2 + $0x8] sm:$0xff] %vm112, %v109
    // Predicated region
    $region14: #{tpu_custom_call.1} parent=1 // pred_check
      _
    $region15: #{tpu_custom_call.1} parent=1 // pred_check_branch
      %116 = sbr.rel (0) target = $region17
    $region16: #{tpu_custom_call.1} parent=1 // pred_region
      %s118 = ssub.s32 256, 256
      %119 = vsyncadd [#allocation3], %s118
      %s120 = sshll.u32 [#allocation2], 4
      %s121 = int_to_ptr.vmem [resolvable:$true] %s120
      %126 = dma.vmem_to_hbm [thread:$0]  %s121, 256, %s3, [#allocation3], 128, 128, 8
    $region17: #{tpu_custom_call.1} parent=1 // pred_fallthru
      _
    // Predicated region
    $region18: #{tpu_custom_call.1} parent=1 // pred_check
      _
    $region19: #{tpu_custom_call.1} parent=1 // pred_check_branch
      %128 = sbr.rel (0) target = $region21
    $region20: #{tpu_custom_call.1} parent=1 // pred_region
      %129 = dma.done [#allocation3], 256
    $region21: #{tpu_custom_call.1} parent=1 // pred_fallthru
      _
    %130 = vsyncpa [#allocation3], 1

</llo_original>
